<compile_context>
chip_gen: v6e
topology: v6e:2x2x1
jax: 0.10.0
libtpu: 0.0.40
codegen_flags: <defaults>
</compile_context>

<pallas_src>
import functools

import jax
import jax.numpy as jnp
from jax import lax
from jax.experimental import pallas as pl
from jax.experimental.pallas import tpu as pltpu


def _gelu_exact(x):
    # nn.GELU() default is the exact erf form.  erf is evaluated in f32 (numerical
    # parity with PyTorch + safe lowering); the input/output dtype is preserved so
    # a bf16 `h` activation stays bf16.
    xf = x.astype(jnp.float32)
    g = 0.5 * xf * (1.0 + lax.erf(xf * 0.7071067811865476))
    return g.astype(x.dtype)


def _round_up(x, m):
    return (x + m - 1) // m * m


def _vmem_capacity_bytes():
    # Generation-aware VMEM capacity (128 MiB on v5e/v6e, 64 MiB per TC on v7x).
    try:
        return int(pltpu.get_tpu_info().vmem_capacity_bytes)
    except Exception:
        return 64 * 2 ** 20  # conservative fallback = smallest current part (v7x)


def _default_gelu_dtype():
    # Keep the FF hidden activation in bf16 only on parts with a bf16 VPU/EUP
    # (v6e / v7x); stay f32 on v5e and unknown parts.
    try:
        kind = jax.devices()[0].device_kind.lower()
    except Exception:
        return jnp.float32
    if any(tag in kind for tag in ("v6", "v7", "tpu7", "trillium")):
        return jnp.bfloat16
    return jnp.float32


def mlpblock_kernel(x_ref, a1_ref, b1a_ref, wt_ref, gbt_ref, g1_ref,
                    a2_ref, b2a_ref, w1_ref, b1_ref, w2_ref, b2_ref, g2_ref,
                    o_ref, *, batch_block, n_pad, gelu_dtype):
    """One grid step: `batch_block` batch elements as a (batch_block*n_pad, Dp) slab."""
    xs = x_ref[...].astype(jnp.float32)                  # (rows, Dp)

    # pre_affine (f32 elementwise; (1, Dp) params broadcast over rows).
    x1 = xs * a1_ref[...] + b1a_ref[...]

    # token_mix: per batch element, (Np, Np) @ (Np, Dp) on the MXU (bf16 operands,
    # f32 accumulation).  The residual/gamma epilogue is fused per slice (no VMEM
    # scratch round trip); gamma_1*bt is pre-broadcast once in the wrapper (gbt),
    # so the unrolled loop emits no repeated broadcast_in_dim.
    wt = wt_ref[...]
    g1 = g1_ref[...]
    gbt = gbt_ref[...]
    x1_mm = x1.astype(wt.dtype)
    x2_parts = []
    for b in range(batch_block):                         # static -> unrolled
        lo = b * n_pad
        tm_b = jnp.dot(wt, x1_mm[lo:lo + n_pad, :],
                       preferred_element_type=jnp.float32)
        x2_parts.append(x1[lo:lo + n_pad, :] + g1 * tm_b + gbt)
    x2 = x2_parts[0] if batch_block == 1 else jnp.concatenate(x2_parts, axis=0)

    # post_affine.
    x3 = x2 * a2_ref[...] + b2a_ref[...]

    # FeedForward on the whole lane-dense slab:
    #   (rows, Dp) @ (Dp, Hp) -> GELU -> (rows, Hp) @ (Hp, Dp).  Dropout = identity.
    # On v6e/v7x (gelu_dtype = bf16) the dot emits the h activation directly in
    # bf16, halving the largest intermediate; on v5e it stays f32.
    x3_mm = x3.astype(w1_ref.dtype)
    if jnp.dtype(gelu_dtype) == jnp.float32:
        h = jnp.dot(x3_mm, w1_ref[...],
                    preferred_element_type=jnp.float32) + b1_ref[...]
    else:
        h = (jnp.dot(x3_mm, w1_ref[...], preferred_element_type=gelu_dtype)
             + b1_ref[...].astype(gelu_dtype))
    h = _gelu_exact(h).astype(w2_ref.dtype)
    ff = jnp.dot(h, w2_ref[...], preferred_element_type=jnp.float32) + b2_ref[...]

    o_ref[...] = (x3 + g2_ref[...] * ff).astype(o_ref.dtype)


def mlpblock_forward(x, params, *, batch_block=None, target_rows=1024,
                     matmul_dtype=jnp.bfloat16, gelu_dtype=None):
    """ResMLP MLPblock forward.  x: (B, N, D); params in PyTorch layout."""
    B, N, D = x.shape
    H = params["w1"].shape[0]        # nn.Linear(dim, mlp_dim).weight is (mlp_dim, dim)
    f32 = jnp.float32
    if gelu_dtype is None:
        gelu_dtype = _default_gelu_dtype()

    # ---- tile-multiple padding.  Patch axis rounds to the packed sublane granule
    # of the matmul dtype (16 for bf16, 32 for int8/fp8, 8 for f32) so the
    # token-mix operands keep native packed layout; feature axes round to 128 lanes
    # so output stores are unmasked.
    mm_itemsize = jnp.dtype(matmul_dtype).itemsize
    sub_granule = {4: 8, 2: 16, 1: 32}.get(mm_itemsize, 8)
    Np = _round_up(N, sub_granule)
    Dp = _round_up(D, 128)
    Hp = _round_up(H, 128)

    # ---- generation-aware VMEM budget and per-step working-set estimate; the
    # batch block is sized so one step fits (weights single-buffered, x/out slabs
    # double-buffered by the pipeline, f32 temporaries + h activation).
    h_itemsize = jnp.dtype(gelu_dtype).itemsize
    capacity = _vmem_capacity_bytes()
    budget = max(32 * 2 ** 20, int(0.75 * capacity))
    fixed_bytes = (mm_itemsize * (Np * Np + 2 * Dp * Hp)      # Wt, W1, W2 (1 buffer)
                   + 4 * Np * Dp                              # gamma_1*bt (pre-broadcast)
                   + 4 * 8 * (7 * Dp + Hp))                   # (1,*) params, sublane-padded
    per_row_bytes = (4 * 4 * Dp                               # double-buffered x/out slabs
                     + 4 * 4 * Dp                             # x1/x2/x3/ff f32 temps
                     + mm_itemsize * Dp                       # bf16 token-mix operand
                     + h_itemsize * Hp + 2 * Hp)              # h activation (+ headroom)
    rows_budget = max(Np, (budget - fixed_bytes) // max(per_row_bytes, 1))

    if batch_block is None:
        # Maximize MXU rows per step within the VMEM budget / target_rows; cap the
        # static unroll of the token-mix loop at 8.  (Single-TC parts want large
        # rows; the batch grid axis stays "parallel" for megacore parts.)
        bblock = max(1, min(B, rows_budget // Np, max(1, target_rows // Np), 8))
        # Prefer a block that divides B (no wasted padded-batch MXU work) as long
        # as it does not cost more than half the rows.
        for cand in range(bblock, 0, -1):
            if B % cand == 0:
                if 2 * cand >= bblock:
                    bblock = cand
                break
    else:
        bblock = max(1, min(B, batch_block))
    Bp = _round_up(B, bblock)
    grid = (Bp // bblock,)
    rows = bblock * Np
    # NOTE(perf): on v7x (2 TCs) an even grid-step count gives perfect sharding of
    # the "parallel" batch axis; at ResMLP-B24 scale on v7x also consider tiling
    # the FF matmuls over Hp if rows must stay >= 1024.

    def pad_to(a, shape):
        a = a.astype(f32)
        return jnp.pad(a, [(0, s - d) for d, s in zip(a.shape, shape)])

    # Aff / gamma params -> (1, Dp) f32 rows (zero padding on the extra features).
    alpha1 = pad_to(params["alpha1"].reshape(1, D), (1, Dp))
    beta1 = pad_to(params["beta1"].reshape(1, D), (1, Dp))
    alpha2 = pad_to(params["alpha2"].reshape(1, D), (1, Dp))
    beta2 = pad_to(params["beta2"].reshape(1, D), (1, Dp))
    g1 = pad_to(params["gamma_1"].reshape(1, D), (1, Dp))
    g2 = pad_to(params["gamma_2"].reshape(1, D), (1, Dp))

    # token_mix nn.Linear(num_patch, num_patch): tm = Wt @ x1 (+ bias over patches).
    # Zero-padded Wt columns keep padded patch rows from leaking into real rows.
    wt = pad_to(params["wt"], (Np, Np)).astype(matmul_dtype)
    # gamma_1 * bt pre-broadcast to (Np, Dp): hoists the bias broadcast out of the
    # kernel's unrolled loop entirely.
    gbt = pad_to(params["bt"].reshape(N, 1) * params["gamma_1"].reshape(1, D),
                 (Np, Dp))

    # FeedForward Linears: pre-transpose from PyTorch (out, in) to (in, out) so the
    # kernel does row-major (rows, in) @ (in, out) matmuls; pre-cast to bf16.
    w1 = pad_to(params["w1"].T, (Dp, Hp)).astype(matmul_dtype)
    b1 = pad_to(params["b1"].reshape(1, H), (1, Hp))
    w2 = pad_to(params["w2"].T, (Hp, Dp)).astype(matmul_dtype)
    b2 = pad_to(params["b2"].reshape(1, D), (1, Dp))

    # x -> lane-dense slab (Bp*Np, Dp).  The pad (and the final slice) is skipped
    # when shapes are already tile-aligned; for unaligned prod shapes it is one
    # extra HBM pass — fuse it into the producer op where possible.
    needs_pad = (Bp, Np, Dp) != (B, N, D)
    xp = jnp.pad(x, ((0, Bp - B), (0, Np - N), (0, Dp - D))) if needs_pad else x
    x_slab = xp.reshape(Bp * Np, Dp)

    est = fixed_bytes + rows * per_row_bytes
    vmem_limit = int(min(budget, max(32 * 2 ** 20, est + est // 2)))

    def invariant(shape):
        n_dims = len(shape)

        def idx(i):
            return (0,) * n_dims

        try:
            # Grid-invariant params/weights: a single VMEM buffer suffices (the
            # default pipeline would double-buffer them -> pure wasted VMEM).
            return pl.BlockSpec(shape, idx, pipeline_mode=pl.Buffered(1))
        except TypeError:
            return pl.BlockSpec(shape, idx)

    kernel = functools.partial(mlpblock_kernel, batch_block=bblock, n_pad=Np,
                               gelu_dtype=gelu_dtype)

    # Advisory cost hint (real, unpadded shapes) so XLA overlaps neighboring ops
    # with this long compute-bound custom call.
    flops = 2 * B * N * N * D + 4 * B * N * D * H
    cost = pl.CostEstimate(
        flops=int(flops),
        transcendentals=int(B * N * H),
        bytes_accessed=int(8 * B * N * D + mm_itemsize * (N * N + 2 * D * H)))

    out_slab = pl.pallas_call(
        kernel,
        out_shape=jax.ShapeDtypeStruct((Bp * Np, Dp), x.dtype),
        grid_spec=pltpu.PrefetchScalarGridSpec(
            num_scalar_prefetch=0,
            grid=grid,
            in_specs=[
                pl.BlockSpec((rows, Dp), lambda i: (i, 0)),  # x slab
                invariant((1, Dp)),    # alpha1
                invariant((1, Dp)),    # beta1
                invariant((Np, Np)),   # W_tok (bf16)
                invariant((Np, Dp)),   # gamma_1 * b_tok (pre-broadcast)
                invariant((1, Dp)),    # gamma_1
                invariant((1, Dp)),    # alpha2
                invariant((1, Dp)),    # beta2
                invariant((Dp, Hp)),   # W1 (bf16, pre-transposed)
                invariant((1, Hp)),    # b1
                invariant((Hp, Dp)),   # W2 (bf16, pre-transposed)
                invariant((1, Dp)),    # b2
                invariant((1, Dp)),    # gamma_2
            ],
            out_specs=pl.BlockSpec((rows, Dp), lambda i: (i, 0)),
        ),
        compiler_params=pltpu.CompilerParams(
            dimension_semantics=("parallel",),
            vmem_limit_bytes=vmem_limit),
        cost_estimate=cost,
    )(x_slab, alpha1, beta1, wt, gbt, g1, alpha2, beta2,
      w1, b1, w2, b2, g2)

    out = out_slab.reshape(Bp, Np, Dp)
    if needs_pad:
        out = out[:B, :N, :D]
    return out


def reference_forward(x, p):
    """Pure-JAX f32 reference mirroring the PyTorch forward."""
    x1 = x * p["alpha1"] + p["beta1"]
    tm = jnp.einsum("nm,bmd->bnd", p["wt"], x1) + p["bt"][None, :, None]
    x2 = x1 + p["gamma_1"] * tm
    x3 = x2 * p["alpha2"] + p["beta2"]
    h = _gelu_exact(jnp.einsum("bnd,hd->bnh", x3, p["w1"]) + p["b1"])
    ff = jnp.einsum("bnh,dh->bnd", h, p["w2"]) + p["b2"]
    return x3 + p["gamma_2"] * ff


def make_params(key, dim, num_patch, mlp_dim, init_values=1e-4):
    ks = jax.random.split(key, 10)
    f32 = jnp.float32
    return {
        # Aff params (PyTorch shape (1, 1, dim)); perturbed from the ones/zeros
        # init so the affine paths are actually exercised.
        "alpha1": 1.0 + 0.1 * jax.random.normal(ks[0], (1, 1, dim), f32),
        "beta1": 0.1 * jax.random.normal(ks[1], (1, 1, dim), f32),
        "alpha2": 1.0 + 0.1 * jax.random.normal(ks[2], (1, 1, dim), f32),
        "beta2": 0.1 * jax.random.normal(ks[3], (1, 1, dim), f32),
        "gamma_1": jnp.full((dim,), init_values, f32),
        "gamma_2": jnp.full((dim,), init_values, f32),
        # token_mix nn.Linear(num_patch, num_patch): weight (N, N), bias (N,).
        "wt": 0.1 * jax.random.normal(ks[4], (num_patch, num_patch), f32),
        "bt": 0.1 * jax.random.normal(ks[5], (num_patch,), f32),
        # FeedForward Linears in PyTorch (out_features, in_features) layout.
        "w1": 0.1 * jax.random.normal(ks[6], (mlp_dim, dim), f32),
        "b1": 0.1 * jax.random.normal(ks[7], (mlp_dim,), f32),
        "w2": 0.1 * jax.random.normal(ks[8], (dim, mlp_dim), f32),
        "b2": 0.1 * jax.random.normal(ks[9], (dim,), f32),
    }


if __name__ == "__main__":
    # Small, deliberately tile-unaligned shapes: batch=3, num_patch=12, dim=32,
    # mlp_dim=64 -> exercises patch/feature padding and batch_block > 1.
    B, N, D, H = 3, 12, 32, 64

    key = jax.random.PRNGKey(0)
    kx, kp = jax.random.split(key)
    x = jax.random.normal(kx, (B, N, D), jnp.float32)
    params = make_params(kp, dim=D, num_patch=N, mlp_dim=H)

    out = jax.block_until_ready(jax.jit(mlpblock_forward)(x, params))
    ref = jax.block_until_ready(reference_forward(x, params))

    assert out.shape == (B, N, D), out.shape
    max_err = float(jnp.max(jnp.abs(out - ref)))
    # bf16 matmul operands with f32 accumulation -> slightly looser tolerance.
    assert jnp.allclose(out, ref, atol=2e-3, rtol=2e-3), f"max abs err {max_err}"
    print("KERNEL_OK")
</pallas_src>

<mosaic_0001>
module attributes {stable_mosaic.version = 11 : i64} {
  func.func @mlpblock_kernel(%arg0: i32, %arg1: memref<48x128xf32, #tpu.memory_space<vmem>>, %arg2: memref<1x128xf32, #tpu.memory_space<vmem>>, %arg3: memref<1x128xf32, #tpu.memory_space<vmem>>, %arg4: memref<16x16xbf16, #tpu.memory_space<vmem>>, %arg5: memref<16x128xf32, #tpu.memory_space<vmem>>, %arg6: memref<1x128xf32, #tpu.memory_space<vmem>>, %arg7: memref<1x128xf32, #tpu.memory_space<vmem>>, %arg8: memref<1x128xf32, #tpu.memory_space<vmem>>, %arg9: memref<128x128xbf16, #tpu.memory_space<vmem>>, %arg10: memref<1x128xf32, #tpu.memory_space<vmem>>, %arg11: memref<128x128xbf16, #tpu.memory_space<vmem>>, %arg12: memref<1x128xf32, #tpu.memory_space<vmem>>, %arg13: memref<1x128xf32, #tpu.memory_space<vmem>>, %arg14: memref<48x128xf32, #tpu.memory_space<vmem>>) attributes {dimension_semantics = [#tpu.dimension_semantics<parallel>], iteration_bounds = array<i64: 1>, scalar_prefetch = 0 : i64, scratch_operands = 0 : i64, tpu.core_type = #tpu.core_type<tc>, window_params = [{transform_indices = @transform_0, window_bounds = array<i64: 48, 128>}, {pipeline_mode = #tpu.pipeline_mode<synchronous>, transform_indices = @transform_1, window_bounds = array<i64: 1, 128>}, {pipeline_mode = #tpu.pipeline_mode<synchronous>, transform_indices = @transform_2, window_bounds = array<i64: 1, 128>}, {pipeline_mode = #tpu.pipeline_mode<synchronous>, transform_indices = @transform_3, window_bounds = array<i64: 16, 16>}, {pipeline_mode = #tpu.pipeline_mode<synchronous>, transform_indices = @transform_4, window_bounds = array<i64: 16, 128>}, {pipeline_mode = #tpu.pipeline_mode<synchronous>, transform_indices = @transform_5, window_bounds = array<i64: 1, 128>}, {pipeline_mode = #tpu.pipeline_mode<synchronous>, transform_indices = @transform_6, window_bounds = array<i64: 1, 128>}, {pipeline_mode = #tpu.pipeline_mode<synchronous>, transform_indices = @transform_7, window_bounds = array<i64: 1, 128>}, {pipeline_mode = #tpu.pipeline_mode<synchronous>, transform_indices = @transform_8, window_bounds = array<i64: 128, 128>}, {pipeline_mode = #tpu.pipeline_mode<synchronous>, transform_indices = @transform_9, window_bounds = array<i64: 1, 128>}, {pipeline_mode = #tpu.pipeline_mode<synchronous>, transform_indices = @transform_10, window_bounds = array<i64: 128, 128>}, {pipeline_mode = #tpu.pipeline_mode<synchronous>, transform_indices = @transform_11, window_bounds = array<i64: 1, 128>}, {pipeline_mode = #tpu.pipeline_mode<synchronous>, transform_indices = @transform_12, window_bounds = array<i64: 1, 128>}, {transform_indices = @transform_13, window_bounds = array<i64: 48, 128>}]} {
    %c0 = arith.constant 0 : index
    %c0_0 = arith.constant 0 : index
    %0 = vector.load %arg1[%c0, %c0_0] : memref<48x128xf32, #tpu.memory_space<vmem>>, vector<48x128xf32>
    %c0_1 = arith.constant 0 : index
    %c0_2 = arith.constant 0 : index
    %1 = vector.load %arg2[%c0_1, %c0_2] : memref<1x128xf32, #tpu.memory_space<vmem>>, vector<1x128xf32>
    %2 = vector.broadcast %1 : vector<1x128xf32> to vector<48x128xf32>
    %3 = arith.mulf %0, %2 : vector<48x128xf32>
    %c0_3 = arith.constant 0 : index
    %c0_4 = arith.constant 0 : index
    %4 = vector.load %arg3[%c0_3, %c0_4] : memref<1x128xf32, #tpu.memory_space<vmem>>, vector<1x128xf32>
    %5 = vector.broadcast %4 : vector<1x128xf32> to vector<48x128xf32>
    %6 = arith.addf %3, %5 : vector<48x128xf32>
    %c0_5 = arith.constant 0 : index
    %c0_6 = arith.constant 0 : index
    %7 = vector.load %arg4[%c0_5, %c0_6] : memref<16x16xbf16, #tpu.memory_space<vmem>>, vector<16x16xbf16>
    %c0_7 = arith.constant 0 : index
    %c0_8 = arith.constant 0 : index
    %8 = vector.load %arg6[%c0_7, %c0_8] : memref<1x128xf32, #tpu.memory_space<vmem>>, vector<1x128xf32>
    %c0_9 = arith.constant 0 : index
    %c0_10 = arith.constant 0 : index
    %9 = vector.load %arg5[%c0_9, %c0_10] : memref<16x128xf32, #tpu.memory_space<vmem>>, vector<16x128xf32>
    %10 = arith.truncf %6 : vector<48x128xf32> to vector<48x128xbf16>
    %11 = vector.extract_strided_slice %10 {offsets = [0, 0], sizes = [16, 128], strides = [1, 1]} : vector<48x128xbf16> to vector<16x128xbf16>
    %cst = arith.constant dense<0.000000e+00> : vector<16x128xf32>
    %12 = tpu.matmul %7, %11, %cst {dimension_numbers = #tpu.dot_dimension_numbers<[1], [0], [0], [1], [0, 0, 1, 1], [], []>} : vector<16x16xbf16>, vector<16x128xbf16>, vector<16x128xf32> -> vector<16x128xf32>
    %13 = vector.extract_strided_slice %6 {offsets = [0, 0], sizes = [16, 128], strides = [1, 1]} : vector<48x128xf32> to vector<16x128xf32>
    %14 = vector.broadcast %8 : vector<1x128xf32> to vector<16x128xf32>
    %15 = arith.mulf %14, %12 : vector<16x128xf32>
    %16 = arith.addf %13, %15 : vector<16x128xf32>
    %17 = arith.addf %16, %9 : vector<16x128xf32>
    %18 = vector.extract_strided_slice %10 {offsets = [16, 0], sizes = [16, 128], strides = [1, 1]} : vector<48x128xbf16> to vector<16x128xbf16>
    %cst_11 = arith.constant dense<0.000000e+00> : vector<16x128xf32>
    %19 = tpu.matmul %7, %18, %cst_11 {dimension_numbers = #tpu.dot_dimension_numbers<[1], [0], [0], [1], [0, 0, 1, 1], [], []>} : vector<16x16xbf16>, vector<16x128xbf16>, vector<16x128xf32> -> vector<16x128xf32>
    %20 = vector.extract_strided_slice %6 {offsets = [16, 0], sizes = [16, 128], strides = [1, 1]} : vector<48x128xf32> to vector<16x128xf32>
    %21 = vector.broadcast %8 : vector<1x128xf32> to vector<16x128xf32>
    %22 = arith.mulf %21, %19 : vector<16x128xf32>
    %23 = arith.addf %20, %22 : vector<16x128xf32>
    %24 = arith.addf %23, %9 : vector<16x128xf32>
    %25 = vector.extract_strided_slice %10 {offsets = [32, 0], sizes = [16, 128], strides = [1, 1]} : vector<48x128xbf16> to vector<16x128xbf16>
    %cst_12 = arith.constant dense<0.000000e+00> : vector<16x128xf32>
    %26 = tpu.matmul %7, %25, %cst_12 {dimension_numbers = #tpu.dot_dimension_numbers<[1], [0], [0], [1], [0, 0, 1, 1], [], []>} : vector<16x16xbf16>, vector<16x128xbf16>, vector<16x128xf32> -> vector<16x128xf32>
    %27 = vector.extract_strided_slice %6 {offsets = [32, 0], sizes = [16, 128], strides = [1, 1]} : vector<48x128xf32> to vector<16x128xf32>
    %28 = vector.broadcast %8 : vector<1x128xf32> to vector<16x128xf32>
    %29 = arith.mulf %28, %26 : vector<16x128xf32>
    %30 = arith.addf %27, %29 : vector<16x128xf32>
    %31 = arith.addf %30, %9 : vector<16x128xf32>
    %32 = tpu.concatenate %17, %24, %31 in 0 : vector<16x128xf32>, vector<16x128xf32>, vector<16x128xf32> -> vector<48x128xf32>
    %c0_13 = arith.constant 0 : index
    %c0_14 = arith.constant 0 : index
    %33 = vector.load %arg7[%c0_13, %c0_14] : memref<1x128xf32, #tpu.memory_space<vmem>>, vector<1x128xf32>
    %34 = vector.broadcast %33 : vector<1x128xf32> to vector<48x128xf32>
    %35 = arith.mulf %32, %34 : vector<48x128xf32>
    %c0_15 = arith.constant 0 : index
    %c0_16 = arith.constant 0 : index
    %36 = vector.load %arg8[%c0_15, %c0_16] : memref<1x128xf32, #tpu.memory_space<vmem>>, vector<1x128xf32>
    %37 = vector.broadcast %36 : vector<1x128xf32> to vector<48x128xf32>
    %38 = arith.addf %35, %37 : vector<48x128xf32>
    %39 = arith.truncf %38 : vector<48x128xf32> to vector<48x128xbf16>
    %c0_17 = arith.constant 0 : index
    %c0_18 = arith.constant 0 : index
    %40 = vector.load %arg9[%c0_17, %c0_18] : memref<128x128xbf16, #tpu.memory_space<vmem>>, vector<128x128xbf16>
    %cst_19 = arith.constant dense<0.000000e+00> : vector<48x128xf32>
    %41 = tpu.matmul %39, %40, %cst_19 {dimension_numbers = #tpu.dot_dimension_numbers<[1], [0], [0], [1], [0, 0, 1, 1], [], []>} : vector<48x128xbf16>, vector<128x128xbf16>, vector<48x128xf32> -> vector<48x128xf32>
    %c0_20 = arith.constant 0 : index
    %c0_21 = arith.constant 0 : index
    %42 = vector.load %arg10[%c0_20, %c0_21] : memref<1x128xf32, #tpu.memory_space<vmem>>, vector<1x128xf32>
    %43 = vector.broadcast %42 : vector<1x128xf32> to vector<48x128xf32>
    %44 = arith.addf %41, %43 : vector<48x128xf32>
    %cst_22 = arith.constant 5.000000e-01 : f32
    %45 = vector.broadcast %cst_22 : f32 to vector<48x128xf32>
    %46 = arith.mulf %45, %44 : vector<48x128xf32>
    %cst_23 = arith.constant 0.707106769 : f32
    %47 = vector.broadcast %cst_23 : f32 to vector<48x128xf32>
    %48 = arith.mulf %44, %47 : vector<48x128xf32>
    %49 = math.erf %48 : vector<48x128xf32>
    %cst_24 = arith.constant 1.000000e+00 : f32
    %50 = vector.broadcast %cst_24 : f32 to vector<48x128xf32>
    %51 = arith.addf %50, %49 : vector<48x128xf32>
    %52 = arith.mulf %46, %51 : vector<48x128xf32>
    %53 = arith.truncf %52 : vector<48x128xf32> to vector<48x128xbf16>
    %c0_25 = arith.constant 0 : index
    %c0_26 = arith.constant 0 : index
    %54 = vector.load %arg11[%c0_25, %c0_26] : memref<128x128xbf16, #tpu.memory_space<vmem>>, vector<128x128xbf16>
    %cst_27 = arith.constant dense<0.000000e+00> : vector<48x128xf32>
    %55 = tpu.matmul %53, %54, %cst_27 {dimension_numbers = #tpu.dot_dimension_numbers<[1], [0], [0], [1], [0, 0, 1, 1], [], []>} : vector<48x128xbf16>, vector<128x128xbf16>, vector<48x128xf32> -> vector<48x128xf32>
    %c0_28 = arith.constant 0 : index
    %c0_29 = arith.constant 0 : index
    %56 = vector.load %arg12[%c0_28, %c0_29] : memref<1x128xf32, #tpu.memory_space<vmem>>, vector<1x128xf32>
    %57 = vector.broadcast %56 : vector<1x128xf32> to vector<48x128xf32>
    %58 = arith.addf %55, %57 : vector<48x128xf32>
    %c0_30 = arith.constant 0 : index
    %c0_31 = arith.constant 0 : index
    %59 = vector.load %arg13[%c0_30, %c0_31] : memref<1x128xf32, #tpu.memory_space<vmem>>, vector<1x128xf32>
    %60 = vector.broadcast %59 : vector<1x128xf32> to vector<48x128xf32>
    %61 = arith.mulf %60, %58 : vector<48x128xf32>
    %62 = arith.addf %38, %61 : vector<48x128xf32>
    %c0_32 = arith.constant 0 : index
    %c0_33 = arith.constant 0 : index
    %63 = vector.load %arg14[%c0_32, %c0_33] : memref<48x128xf32, #tpu.memory_space<vmem>>, vector<48x128xf32>
    tpu.vector_store %arg14[%c0_32, %c0_33], %62 {strides = array<i32>} : memref<48x128xf32, #tpu.memory_space<vmem>>, vector<48x128xf32>,
    return
  }
  func.func @transform_0(%arg0: i32) -> (i32, i32) {
    %c0_i32 = arith.constant 0 : i32
    %c0_i32_0 = arith.constant 0 : i32
    return %arg0, %c0_i32 : i32, i32
  }
  func.func @transform_1(%arg0: i32) -> (i32, i32) {
    %c0_i32 = arith.constant 0 : i32
    %c0_i32_0 = arith.constant 0 : i32
    %c0_i32_1 = arith.constant 0 : i32
    return %c0_i32, %c0_i32_0 : i32, i32
  }
  func.func @transform_2(%arg0: i32) -> (i32, i32) {
    %c0_i32 = arith.constant 0 : i32
    %c0_i32_0 = arith.constant 0 : i32
    %c0_i32_1 = arith.constant 0 : i32
    return %c0_i32, %c0_i32_0 : i32, i32
  }
  func.func @transform_3(%arg0: i32) -> (i32, i32) {
    %c0_i32 = arith.constant 0 : i32
    %c0_i32_0 = arith.constant 0 : i32
    %c0_i32_1 = arith.constant 0 : i32
    return %c0_i32, %c0_i32_0 : i32, i32
  }
  func.func @transform_4(%arg0: i32) -> (i32, i32) {
    %c0_i32 = arith.constant 0 : i32
    %c0_i32_0 = arith.constant 0 : i32
    %c0_i32_1 = arith.constant 0 : i32
    return %c0_i32, %c0_i32_0 : i32, i32
  }
  func.func @transform_5(%arg0: i32) -> (i32, i32) {
    %c0_i32 = arith.constant 0 : i32
    %c0_i32_0 = arith.constant 0 : i32
    %c0_i32_1 = arith.constant 0 : i32
    return %c0_i32, %c0_i32_0 : i32, i32
  }
  func.func @transform_6(%arg0: i32) -> (i32, i32) {
    %c0_i32 = arith.constant 0 : i32
    %c0_i32_0 = arith.constant 0 : i32
    %c0_i32_1 = arith.constant 0 : i32
    return %c0_i32, %c0_i32_0 : i32, i32
  }
  func.func @transform_7(%arg0: i32) -> (i32, i32) {
    %c0_i32 = arith.constant 0 : i32
    %c0_i32_0 = arith.constant 0 : i32
    %c0_i32_1 = arith.constant 0 : i32
    return %c0_i32, %c0_i32_0 : i32, i32
  }
  func.func @transform_8(%arg0: i32) -> (i32, i32) {
    %c0_i32 = arith.constant 0 : i32
    %c0_i32_0 = arith.constant 0 : i32
    %c0_i32_1 = arith.constant 0 : i32
    return %c0_i32, %c0_i32_0 : i32, i32
  }
  func.func @transform_9(%arg0: i32) -> (i32, i32) {
    %c0_i32 = arith.constant 0 : i32
    %c0_i32_0 = arith.constant 0 : i32
    %c0_i32_1 = arith.constant 0 : i32
    return %c0_i32, %c0_i32_0 : i32, i32
  }
  func.func @transform_10(%arg0: i32) -> (i32, i32) {
    %c0_i32 = arith.constant 0 : i32
    %c0_i32_0 = arith.constant 0 : i32
    %c0_i32_1 = arith.constant 0 : i32
    return %c0_i32, %c0_i32_0 : i32, i32
  }
  func.func @transform_11(%arg0: i32) -> (i32, i32) {
    %c0_i32 = arith.constant 0 : i32
    %c0_i32_0 = arith.constant 0 : i32
    %c0_i32_1 = arith.constant 0 : i32
    return %c0_i32, %c0_i32_0 : i32, i32
  }
  func.func @transform_12(%arg0: i32) -> (i32, i32) {
    %c0_i32 = arith.constant 0 : i32
    %c0_i32_0 = arith.constant 0 : i32
    %c0_i32_1 = arith.constant 0 : i32
    return %c0_i32, %c0_i32_0 : i32, i32
  }
  func.func @transform_13(%arg0: i32) -> (i32, i32) {
    %c0_i32 = arith.constant 0 : i32
    %c0_i32_0 = arith.constant 0 : i32
    return %arg0, %c0_i32 : i32, i32
  }
}

</mosaic_0001>

<llo_original>
// kernel: mlpblock_forward.1
$region0: #{mlpblock_forward.1}
  #allocation0 [shape = 'u32[]', space=smem, size = 0x4, offset = 0x4, fixed_abs, tag = 'smem constant byte address 0x4 - core index']
  #allocation1 [shape = 'u32[144,128]{1,0:T(1,128)}', space=vmem, size = 0x12000, scoped, tag = 'internal scratch']
  %s0 = inlined_call_operand.vmem [shape: f32[48,128], index: 0, kind: input, shape index: {}]
  %s1 = inlined_call_operand.vmem [shape: f32[1,128], index: 1, kind: input, shape index: {}]
  %s2 = inlined_call_operand.vmem [shape: f32[1,128], index: 2, kind: input, shape index: {}]
  %s3 = inlined_call_operand.vmem [shape: bf16[16,16], index: 3, kind: input, shape index: {}]
  %s4 = inlined_call_operand.vmem [shape: f32[16,128], index: 4, kind: input, shape index: {}]
  %s5 = inlined_call_operand.vmem [shape: f32[1,128], index: 5, kind: input, shape index: {}]
  %s6 = inlined_call_operand.vmem [shape: f32[1,128], index: 6, kind: input, shape index: {}]
  %s7 = inlined_call_operand.vmem [shape: f32[1,128], index: 7, kind: input, shape index: {}]
  %s8 = inlined_call_operand.vmem [shape: bf16[128,128], index: 8, kind: input, shape index: {}]
  %s9 = inlined_call_operand.vmem [shape: f32[1,128], index: 9, kind: input, shape index: {}]
  %s10 = inlined_call_operand.vmem [shape: bf16[128,128], index: 10, kind: input, shape index: {}]
  %s11 = inlined_call_operand.vmem [shape: f32[1,128], index: 11, kind: input, shape index: {}]
  %s12 = inlined_call_operand.vmem [shape: f32[1,128], index: 12, kind: input, shape index: {}]
  %s13 = inlined_call_operand.hbm [shape: f32[48,128], index: 13, kind: output, shape index: {}]
  %s14 = sld [smem:[#allocation0]]
  $region62: #{mlpblock_forward.1} parent=0
    _
  %s16 = ssub.s32 1, %s14
  %s17 = scalar_select 0, %s16, %s14
  $region1: #{mlpblock_forward.1} parent=0
    #allocation2 [shape = 'u8[24576]{0}', space=vmem, size = 0x6000, scoped, tag = 'output window, operand 0, single buffered']
    #allocation3 [shape = 's32[1]{0}', space=sflag, size = 0x4, scoped, tag = 'scoped memory for mlpblock_forward.1']
    %18 = vsyncpa [#allocation3], 0
    // Predicated region
    $region2: #{mlpblock_forward.1} parent=1 // pred_check
      _
    $region3: #{mlpblock_forward.1} parent=1 // pred_check_branch
      %20 = sbr.rel (0) target = $region5
    $region4: #{mlpblock_forward.1} parent=1 // pred_region
      _
    $region5: #{mlpblock_forward.1} parent=1 // pred_fallthru
      _
    // Predicated region
    $region6: #{mlpblock_forward.1} parent=1 // pred_check
      _
    $region7: #{mlpblock_forward.1} parent=1 // pred_check_branch
      %22 = sbr.rel (0) target = $region9
    $region8: #{mlpblock_forward.1} parent=1 // pred_region
      _
    $region9: #{mlpblock_forward.1} parent=1 // pred_fallthru
      _
    // Predicated region
    $region10: #{mlpblock_forward.1} parent=1 // pred_check
      _
    $region11: #{mlpblock_forward.1} parent=1 // pred_check_branch
      %24 = sbr.rel (0) target = $region13
    $region12: #{mlpblock_forward.1} parent=1 // pred_region
      _
    $region13: #{mlpblock_forward.1} parent=1 // pred_fallthru
      _
    // Predicated region
    $region14: #{mlpblock_forward.1} parent=1 // pred_check
      _
    $region15: #{mlpblock_forward.1} parent=1 // pred_check_branch
      %26 = sbr.rel (0) target = $region17
    $region16: #{mlpblock_forward.1} parent=1 // pred_region
      _
    $region17: #{mlpblock_forward.1} parent=1 // pred_fallthru
      _
    // Predicated region
    $region18: #{mlpblock_forward.1} parent=1 // pred_check
      _
    $region19: #{mlpblock_forward.1} parent=1 // pred_check_branch
      %28 = sbr.rel (0) target = $region21
    $region20: #{mlpblock_forward.1} parent=1 // pred_region
      _
    $region21: #{mlpblock_forward.1} parent=1 // pred_fallthru
      _
    // Predicated region
    $region22: #{mlpblock_forward.1} parent=1 // pred_check
      _
    $region23: #{mlpblock_forward.1} parent=1 // pred_check_branch
      %30 = sbr.rel (0) target = $region25
    $region24: #{mlpblock_forward.1} parent=1 // pred_region
      _
    $region25: #{mlpblock_forward.1} parent=1 // pred_fallthru
      _
    // Predicated region
    $region26: #{mlpblock_forward.1} parent=1 // pred_check
      _
    $region27: #{mlpblock_forward.1} parent=1 // pred_check_branch
      %32 = sbr.rel (0) target = $region29
    $region28: #{mlpblock_forward.1} parent=1 // pred_region
      _
    $region29: #{mlpblock_forward.1} parent=1 // pred_fallthru
      _
    // Predicated region
    $region30: #{mlpblock_forward.1} parent=1 // pred_check
      _
    $region31: #{mlpblock_forward.1} parent=1 // pred_check_branch
      %34 = sbr.rel (0) target = $region33
    $region32: #{mlpblock_forward.1} parent=1 // pred_region
      _
    $region33: #{mlpblock_forward.1} parent=1 // pred_fallthru
      _
    // Predicated region
    $region34: #{mlpblock_forward.1} parent=1 // pred_check
      _
    $region35: #{mlpblock_forward.1} parent=1 // pred_check_branch
      %36 = sbr.rel (0) target = $region37
    $region36: #{mlpblock_forward.1} parent=1 // pred_region
      _
    $region37: #{mlpblock_forward.1} parent=1 // pred_fallthru
      _
    // Predicated region
    $region38: #{mlpblock_forward.1} parent=1 // pred_check
      _
    $region39: #{mlpblock_forward.1} parent=1 // pred_check_branch
      %38 = sbr.rel (0) target = $region41
    $region40: #{mlpblock_forward.1} parent=1 // pred_region
      _
    $region41: #{mlpblock_forward.1} parent=1 // pred_fallthru
      _
    // Predicated region
    $region42: #{mlpblock_forward.1} parent=1 // pred_check
      _
    $region43: #{mlpblock_forward.1} parent=1 // pred_check_branch
      %40 = sbr.rel (0) target = $region45
    $region44: #{mlpblock_forward.1} parent=1 // pred_region
      _
    $region45: #{mlpblock_forward.1} parent=1 // pred_fallthru
      _
    // Predicated region
    $region46: #{mlpblock_forward.1} parent=1 // pred_check
      _
    $region47: #{mlpblock_forward.1} parent=1 // pred_check_branch
      %42 = sbr.rel (0) target = $region49
    $region48: #{mlpblock_forward.1} parent=1 // pred_region
      _
    $region49: #{mlpblock_forward.1} parent=1 // pred_fallthru
      _
    // Predicated region
    $region50: #{mlpblock_forward.1} parent=1 // pred_check
      _
    $region51: #{mlpblock_forward.1} parent=1 // pred_check_branch
      %44 = sbr.rel (0) target = $region53
    $region52: #{mlpblock_forward.1} parent=1 // pred_region
      _
    $region53: #{mlpblock_forward.1} parent=1 // pred_fallthru
      _
    %v46 = vld [vmem:[%s0] sm:$0xff]
    %v47 = vld [vmem:[%s0 + $0x8] sm:$0xff]
    %v48 = vld [vmem:[%s0 + $0x10] sm:$0xff]
    %v49 = vld [vmem:[%s0 + $0x18] sm:$0xff]
    %v50 = vld [vmem:[%s0 + $0x20] sm:$0xff]
    %v51 = vld [vmem:[%s0 + $0x28] sm:$0xff]
    %v52 = vld [vmem:[%s1] sm:$0x1]
    %v54 = vlaneseq
    %v55 = vshrl.u32 %v54, 7
    %v56 = vsub.s32 0, %v55
    %v57 = vrot.slane %v52, %v56
    %v59 = vmul.f32 %v46, %v57
    %v60 = vmul.f32 %v47, %v57
    %v61 = vmul.f32 %v48, %v57
    %v62 = vmul.f32 %v49, %v57
    %v63 = vmul.f32 %v50, %v57
    %v64 = vmul.f32 %v51, %v57
    %v65 = vld [vmem:[%s2] sm:$0x1]
    %v67 = vlaneseq
    %v68 = vshrl.u32 %v67, 7
    %v69 = vsub.s32 0, %v68
    %v70 = vrot.slane %v65, %v69
    %v72 = vadd.f32 %v59, %v70
    %v73 = vadd.f32 %v60, %v70
    %v74 = vadd.f32 %v61, %v70
    %v75 = vadd.f32 %v62, %v70
    %v76 = vadd.f32 %v63, %v70
    %v77 = vadd.f32 %v64, %v70
    %v78 = vld [vmem:[%s3] sm:$0xf]
    %v79 = vld [vmem:[%s3 + $0x4] sm:$0xf]
    %v80 = vld [vmem:[%s5] sm:$0x1]
    %v81 = vld [vmem:[%s4] sm:$0xff]
    %v82 = vld [vmem:[%s4 + $0x8] sm:$0xff]
    %v83 = vpack.c.bf16 %v73, %v72
    %v84 = vpack.c.bf16 %v75, %v74
    %v85 = vpack.c.bf16 %v77, %v76
    %v88 = vunpack.c.l.b16 %v78
    %v89 = vunpack.c.l.b16 %v79
    %v90 = vpack.c.b16 %v89, %v88
    %vm91 = vcmask 130048
    %v93 = vsel %vm91, %v90, 0
    %95 = vmatprep.subr.bf16.mxu0 0
    %96 = vmatpush1.bf16.msra.mxu0 0
    %97 = vmatprep.subr.bf16.mxu0 0
    %98 = vmatpush1.bf16.msra.mxu0 0
    %99 = vmatprep.subr.bf16.mxu0 0
    %100 = vmatpush1.bf16.msra.mxu0 0
    %101 = vmatprep.subr.bf16.mxu0 0
    %102 = vmatpush1.bf16.msra.mxu0 0
    %103 = vmatprep.subr.bf16.mxu0 0
    %104 = vmatpush1.bf16.msra.mxu0 0
    %105 = vmatprep.subr.bf16.mxu0 0
    %106 = vmatpush1.bf16.msra.mxu0 0
    %107 = vmatprep.subr.bf16.mxu0 0
    %108 = vmatpush1.bf16.msra.mxu0 0
    %109 = vmatprep.subr.bf16.mxu0 0
    %110 = vmatpush1.bf16.msra.mxu0 %v83
    %111 = vmatprep.subr.bf16.mxu0 0
    %112 = vmatpush2.bf16.msra.mxu0 0
    %113 = vmatprep.subr.bf16.mxu0 0
    %114 = vmatpush2.bf16.msra.mxu0 0
    %115 = vmatprep.subr.bf16.mxu0 0
    %116 = vmatpush2.bf16.msra.mxu0 0
    %117 = vmatprep.subr.bf16.mxu0 0
    %118 = vmatpush2.bf16.msra.mxu0 0
    %119 = vmatprep.subr.bf16.mxu0 0
    %120 = vmatpush2.bf16.msra.mxu0 0
    %121 = vmatprep.subr.bf16.mxu0 0
    %122 = vmatpush2.bf16.msra.mxu0 0
    %123 = vmatprep.subr.bf16.mxu0 0
    %124 = vmatpush2.bf16.msra.mxu0 0
    %125 = vmatprep.subr.bf16.mxu0 0
    %126 = vmatpush2.bf16.msra.mxu0 0
    %127 = vmatprep.mubr.bf16.mxu0 0
    %128 = vmatmul.mubr.bf16.gmra.mxu0 %v93
    %v129 = vpop.f32.mrf.mxu0
    %v130 = vadd.f32 0.0, %v129
    %v131 = vpop.f32.mrf.mxu0
    %v132 = vpop.f32.mrf.mxu0
    %v133 = vadd.f32 0.0, %v132
    %v134 = vpop.f32.mrf.mxu0
    %135 = vdwg.mxu0
    %v137 = vlaneseq
    %v138 = vshrl.u32 %v137, 7
    %v139 = vsub.s32 0, %v138
    %v140 = vrot.slane %v80, %v139
    %v142 = vmul.f32 %v140, %v130
    %v143 = vmul.f32 %v140, %v133
    %v144 = vadd.f32 %v72, %v142
    %v145 = vadd.f32 %v73, %v143
    %v146 = vadd.f32 %v144, %v81
    %v147 = vadd.f32 %v145, %v82
    %148 = vmatprep.subr.bf16.mxu0 0
    %149 = vmatpush1.bf16.msra.mxu0 0
    %150 = vmatprep.subr.bf16.mxu0 0
    %151 = vmatpush1.bf16.msra.mxu0 0
    %152 = vmatprep.subr.bf16.mxu0 0
    %153 = vmatpush1.bf16.msra.mxu0 0
    %154 = vmatprep.subr.bf16.mxu0 0
    %155 = vmatpush1.bf16.msra.mxu0 0
    %156 = vmatprep.subr.bf16.mxu0 0
    %157 = vmatpush1.bf16.msra.mxu0 0
    %158 = vmatprep.subr.bf16.mxu0 0
    %159 = vmatpush1.bf16.msra.mxu0 0
    %160 = vmatprep.subr.bf16.mxu0 0
    %161 = vmatpush1.bf16.msra.mxu0 0
    %162 = vmatprep.subr.bf16.mxu0 0
    %163 = vmatpush1.bf16.msra.mxu0 %v84
    %164 = vmatprep.subr.bf16.mxu0 0
    %165 = vmatpush2.bf16.msra.mxu0 0
    %166 = vmatprep.subr.bf16.mxu0 0
    %167 = vmatpush2.bf16.msra.mxu0 0
    %168 = vmatprep.subr.bf16.mxu0 0
    %169 = vmatpush2.bf16.msra.mxu0 0
    %170 = vmatprep.subr.bf16.mxu0 0
    %171 = vmatpush2.bf16.msra.mxu0 0
    %172 = vmatprep.subr.bf16.mxu0 0
    %173 = vmatpush2.bf16.msra.mxu0 0
    %174 = vmatprep.subr.bf16.mxu0 0
    %175 = vmatpush2.bf16.msra.mxu0 0
    %176 = vmatprep.subr.bf16.mxu0 0
    %177 = vmatpush2.bf16.msra.mxu0 0
    %178 = vmatprep.subr.bf16.mxu0 0
    %179 = vmatpush2.bf16.msra.mxu0 0
    %180 = vmatprep.mubr.bf16.mxu0 0
    %181 = vmatmul.mubr.bf16.gmra.mxu0 %v93
    %v182 = vpop.f32.mrf.mxu0
    %v183 = vadd.f32 0.0, %v182
    %v184 = vpop.f32.mrf.mxu0
    %v185 = vpop.f32.mrf.mxu0
    %v186 = vadd.f32 0.0, %v185
    %v187 = vpop.f32.mrf.mxu0
    %188 = vdwg.mxu0
    %v189 = vmul.f32 %v140, %v183
    %v190 = vmul.f32 %v140, %v186
    %v191 = vadd.f32 %v74, %v189
    %v192 = vadd.f32 %v75, %v190
    %v193 = vadd.f32 %v191, %v81
    %v194 = vadd.f32 %v192, %v82
    %195 = vmatprep.subr.bf16.mxu0 0
    %196 = vmatpush1.bf16.msra.mxu0 0
    %197 = vmatprep.subr.bf16.mxu0 0
    %198 = vmatpush1.bf16.msra.mxu0 0
    %199 = vmatprep.subr.bf16.mxu0 0
    %200 = vmatpush1.bf16.msra.mxu0 0
    %201 = vmatprep.subr.bf16.mxu0 0
    %202 = vmatpush1.bf16.msra.mxu0 0
    %203 = vmatprep.subr.bf16.mxu0 0
    %204 = vmatpush1.bf16.msra.mxu0 0
    %205 = vmatprep.subr.bf16.mxu0 0
    %206 = vmatpush1.bf16.msra.mxu0 0
    %207 = vmatprep.subr.bf16.mxu0 0
    %208 = vmatpush1.bf16.msra.mxu0 0
    %209 = vmatprep.subr.bf16.mxu0 0
    %210 = vmatpush1.bf16.msra.mxu0 %v85
    %211 = vmatprep.subr.bf16.mxu0 0
    %212 = vmatpush2.bf16.msra.mxu0 0
    %213 = vmatprep.subr.bf16.mxu0 0
    %214 = vmatpush2.bf16.msra.mxu0 0
    %215 = vmatprep.subr.bf16.mxu0 0
    %216 = vmatpush2.bf16.msra.mxu0 0
    %217 = vmatprep.subr.bf16.mxu0 0
    %218 = vmatpush2.bf16.msra.mxu0 0
    %219 = vmatprep.subr.bf16.mxu0 0
    %220 = vmatpush2.bf16.msra.mxu0 0
    %221 = vmatprep.subr.bf16.mxu0 0
    %222 = vmatpush2.bf16.msra.mxu0 0
    %223 = vmatprep.subr.bf16.mxu0 0
    %224 = vmatpush2.bf16.msra.mxu0 0
    %225 = vmatprep.subr.bf16.mxu0 0
    %226 = vmatpush2.bf16.msra.mxu0 0
    %227 = vmatprep.mubr.bf16.mxu0 0
    %228 = vmatmul.mubr.bf16.gmra.mxu0 %v93
    %v229 = vpop.f32.mrf.mxu0
    %v230 = vadd.f32 0.0, %v229
    %v231 = vpop.f32.mrf.mxu0
    %v232 = vpop.f32.mrf.mxu0
    %v233 = vadd.f32 0.0, %v232
    %v234 = vpop.f32.mrf.mxu0
    %235 = vdwg.mxu0
    %v236 = vmul.f32 %v140, %v230
    %v237 = vmul.f32 %v140, %v233
    %v238 = vadd.f32 %v76, %v236
    %v239 = vadd.f32 %v77, %v237
    %v240 = vadd.f32 %v238, %v81
    %v241 = vadd.f32 %v239, %v82
    %v242 = vld [vmem:[%s6] sm:$0x1]
    %v244 = vlaneseq
    %v245 = vshrl.u32 %v244, 7
    %v246 = vsub.s32 0, %v245
    %v247 = vrot.slane %v242, %v246
    %v249 = vmul.f32 %v146, %v247
    %v250 = vmul.f32 %v147, %v247
    %v251 = vmul.f32 %v193, %v247
    %v252 = vmul.f32 %v194, %v247
    %v253 = vmul.f32 %v240, %v247
    %v254 = vmul.f32 %v241, %v247
    %v255 = vld [vmem:[%s7] sm:$0x1]
    %v257 = vlaneseq
    %v258 = vshrl.u32 %v257, 7
    %v259 = vsub.s32 0, %v258
    %v260 = vrot.slane %v255, %v259
    %v262 = vadd.f32 %v249, %v260
    %v263 = vadd.f32 %v250, %v260
    %v264 = vadd.f32 %v251, %v260
    %v265 = vadd.f32 %v252, %v260
    %v266 = vadd.f32 %v253, %v260
    %v267 = vadd.f32 %v254, %v260
    %v268 = vpack.c.bf16 %v263, %v262
    %v269 = vpack.c.bf16 %v265, %v264
    %v270 = vpack.c.bf16 %v267, %v266
    %v271 = vld [vmem:[%s8] sm:$0xf]
    %v272 = vld [vmem:[%s8 + $0x4] sm:$0xf]
    %v273 = vld [vmem:[%s8 + $0x8] sm:$0xf]
    %v274 = vld [vmem:[%s8 + $0xc] sm:$0xf]
    %v275 = vld [vmem:[%s8 + $0x10] sm:$0xf]
    %v276 = vld [vmem:[%s8 + $0x14] sm:$0xf]
    %v277 = vld [vmem:[%s8 + $0x18] sm:$0xf]
    %v278 = vld [vmem:[%s8 + $0x1c] sm:$0xf]
    %v279 = vld [vmem:[%s8 + $0x20] sm:$0xf]
    %v280 = vld [vmem:[%s8 + $0x24] sm:$0xf]
    %v281 = vld [vmem:[%s8 + $0x28] sm:$0xf]
    %v282 = vld [vmem:[%s8 + $0x2c] sm:$0xf]
    %v283 = vld [vmem:[%s8 + $0x30] sm:$0xf]
    %v284 = vld [vmem:[%s8 + $0x34] sm:$0xf]
    %v285 = vld [vmem:[%s8 + $0x38] sm:$0xf]
    %v286 = vld [vmem:[%s8 + $0x3c] sm:$0xf]
    %v287 = vld [vmem:[%s9] sm:$0x1]
    %v289 = vlaneseq
    %v290 = vshrl.u32 %v289, 7
    %v291 = vsub.s32 0, %v290
    %v292 = vrot.slane %v287, %v291
    %v310 = vunpack.c.l.b16 %v271
    %v311 = vunpack.c.l.b16 %v272
    %v312 = vunpack.c.l.b16 %v273
    %v313 = vunpack.c.l.b16 %v274
    %v314 = vunpack.c.l.b16 %v275
    %v315 = vunpack.c.l.b16 %v276
    %v316 = vunpack.c.l.b16 %v277
    %v317 = vunpack.c.l.b16 %v278
    %v318 = vunpack.c.l.b16 %v279
    %v319 = vunpack.c.l.b16 %v280
    %v320 = vunpack.c.l.b16 %v281
    %v321 = vunpack.c.l.b16 %v282
    %v322 = vunpack.c.l.b16 %v283
    %v323 = vunpack.c.l.b16 %v284
    %v324 = vunpack.c.l.b16 %v285
    %v325 = vunpack.c.l.b16 %v286
    %v326 = vpack.c.b16 %v311, %v310
    %v327 = vpack.c.b16 %v313, %v312
    %v328 = vpack.c.b16 %v315, %v314
    %v329 = vpack.c.b16 %v317, %v316
    %v330 = vpack.c.b16 %v319, %v318
    %v331 = vpack.c.b16 %v321, %v320
    %v332 = vpack.c.b16 %v323, %v322
    %v333 = vpack.c.b16 %v325, %v324
    %342 = vmatprep.subr.bf16.mxu0 0
    %343 = vmatpush1.bf16.msra.mxu0 %v333
    %344 = vmatprep.subr.bf16.mxu0 0
    %345 = vmatpush1.bf16.msra.mxu0 %v332
    %346 = vmatprep.subr.bf16.mxu0 0
    %347 = vmatpush1.bf16.msra.mxu0 %v331
    %348 = vmatprep.subr.bf16.mxu0 0
    %349 = vmatpush1.bf16.msra.mxu0 %v330
    %350 = vmatprep.subr.bf16.mxu0 0
    %351 = vmatpush1.bf16.msra.mxu0 %v329
    %352 = vmatprep.subr.bf16.mxu0 0
    %353 = vmatpush1.bf16.msra.mxu0 %v328
    %354 = vmatprep.subr.bf16.mxu0 0
    %355 = vmatpush1.bf16.msra.mxu0 %v327
    %356 = vmatprep.subr.bf16.mxu0 0
    %357 = vmatpush1.bf16.msra.mxu0 %v326
    %358 = vmatprep.subr.bf16.mxu0 0
    %359 = vmatpush2.bf16.msra.mxu0 0
    %360 = vmatprep.subr.bf16.mxu0 0
    %361 = vmatpush2.bf16.msra.mxu0 0
    %362 = vmatprep.subr.bf16.mxu0 0
    %363 = vmatpush2.bf16.msra.mxu0 0
    %364 = vmatprep.subr.bf16.mxu0 0
    %365 = vmatpush2.bf16.msra.mxu0 0
    %366 = vmatprep.subr.bf16.mxu0 0
    %367 = vmatpush2.bf16.msra.mxu0 0
    %368 = vmatprep.subr.bf16.mxu0 0
    %369 = vmatpush2.bf16.msra.mxu0 0
    %370 = vmatprep.subr.bf16.mxu0 0
    %371 = vmatpush2.bf16.msra.mxu0 0
    %372 = vmatprep.subr.bf16.mxu0 0
    %373 = vmatpush2.bf16.msra.mxu0 0
    %374 = vmatprep.mubr.bf16.mxu0 0
    %375 = vmatmul.mubr.bf16.gmra.mxu0 %v268
    %v376 = vpop.f32.mrf.mxu0
    %v377 = vadd.f32 %v292, %v376
    %v378 = vpop.f32.mrf.mxu0
    %v379 = vpop.f32.mrf.mxu0
    %v380 = vadd.f32 %v292, %v379
    %v381 = vpop.f32.mrf.mxu0
    %382 = vmatprep.mubr.bf16.mxu0 0
    %383 = vmatmul.mubr.bf16.gmra.mxu0 %v269
    %v384 = vpop.f32.mrf.mxu0
    %v385 = vadd.f32 %v292, %v384
    %v386 = vpop.f32.mrf.mxu0
    %v387 = vpop.f32.mrf.mxu0
    %v388 = vadd.f32 %v292, %v387
    %v389 = vpop.f32.mrf.mxu0
    %390 = vmatprep.mubr.bf16.mxu0 0
    %391 = vmatmul.mubr.bf16.gmra.mxu0 %v270
    %v392 = vpop.f32.mrf.mxu0
    %v393 = vadd.f32 %v292, %v392
    %v394 = vpop.f32.mrf.mxu0
    %v395 = vpop.f32.mrf.mxu0
    %v396 = vadd.f32 %v292, %v395
    %v397 = vpop.f32.mrf.mxu0
    %398 = vdwg.mxu0
    %v399 = vmul.f32 %v377, 0.5
    %v400 = vmul.f32 %v380, 0.5
    %v401 = vmul.f32 %v385, 0.5
    %v402 = vmul.f32 %v388, 0.5
    %v403 = vmul.f32 %v393, 0.5
    %v404 = vmul.f32 %v396, 0.5
    %v405 = vmul.f32 %v377, 0.70710677
    %v406 = vmul.f32 %v380, 0.70710677
    %v407 = vmul.f32 %v385, 0.70710677
    %v408 = vmul.f32 %v388, 0.70710677
    %v409 = vmul.f32 %v393, 0.70710677
    %v410 = vmul.f32 %v396, 0.70710677
    %v411 = verf.f32.pop %v405
    %v412 = verf.f32.pop %v406
    %v413 = verf.f32.pop %v407
    %v414 = verf.f32.pop %v408
    %v415 = verf.f32.pop %v409
    %v416 = verf.f32.pop %v410
    %v417 = vadd.f32 %v411, 1.0
    %v418 = vadd.f32 %v412, 1.0
    %v419 = vadd.f32 %v413, 1.0
    %v420 = vadd.f32 %v414, 1.0
    %v421 = vadd.f32 %v415, 1.0
    %v422 = vadd.f32 %v416, 1.0
    %v423 = vmul.f32 %v399, %v417
    %v424 = vmul.f32 %v400, %v418
    %v425 = vmul.f32 %v401, %v419
    %v426 = vmul.f32 %v402, %v420
    %v427 = vmul.f32 %v403, %v421
    %v428 = vmul.f32 %v404, %v422
    %v429 = vpack.c.bf16 %v424, %v423
    %v430 = vpack.c.bf16 %v426, %v425
    %v431 = vpack.c.bf16 %v428, %v427
    %v432 = vld [vmem:[%s10] sm:$0xf]
    %v433 = vld [vmem:[%s10 + $0x4] sm:$0xf]
    %v434 = vld [vmem:[%s10 + $0x8] sm:$0xf]
    %v435 = vld [vmem:[%s10 + $0xc] sm:$0xf]
    %v436 = vld [vmem:[%s10 + $0x10] sm:$0xf]
    %v437 = vld [vmem:[%s10 + $0x14] sm:$0xf]
    %v438 = vld [vmem:[%s10 + $0x18] sm:$0xf]
    %v439 = vld [vmem:[%s10 + $0x1c] sm:$0xf]
    %v440 = vld [vmem:[%s10 + $0x20] sm:$0xf]
    %v441 = vld [vmem:[%s10 + $0x24] sm:$0xf]
    %v442 = vld [vmem:[%s10 + $0x28] sm:$0xf]
    %v443 = vld [vmem:[%s10 + $0x2c] sm:$0xf]
    %v444 = vld [vmem:[%s10 + $0x30] sm:$0xf]
    %v445 = vld [vmem:[%s10 + $0x34] sm:$0xf]
    %v446 = vld [vmem:[%s10 + $0x38] sm:$0xf]
    %v447 = vld [vmem:[%s10 + $0x3c] sm:$0xf]
    %v448 = vld [vmem:[%s11] sm:$0x1]
    %v450 = vlaneseq
    %v451 = vshrl.u32 %v450, 7
    %v452 = vsub.s32 0, %v451
    %v453 = vrot.slane %v448, %v452
    %v471 = vunpack.c.l.b16 %v432
    %v472 = vunpack.c.l.b16 %v433
    %v473 = vunpack.c.l.b16 %v434
    %v474 = vunpack.c.l.b16 %v435
    %v475 = vunpack.c.l.b16 %v436
    %v476 = vunpack.c.l.b16 %v437
    %v477 = vunpack.c.l.b16 %v438
    %v478 = vunpack.c.l.b16 %v439
    %v479 = vunpack.c.l.b16 %v440
    %v480 = vunpack.c.l.b16 %v441
    %v481 = vunpack.c.l.b16 %v442
    %v482 = vunpack.c.l.b16 %v443
    %v483 = vunpack.c.l.b16 %v444
    %v484 = vunpack.c.l.b16 %v445
    %v485 = vunpack.c.l.b16 %v446
    %v486 = vunpack.c.l.b16 %v447
    %v487 = vpack.c.b16 %v472, %v471
    %v488 = vpack.c.b16 %v474, %v473
    %v489 = vpack.c.b16 %v476, %v475
    %v490 = vpack.c.b16 %v478, %v477
    %v491 = vpack.c.b16 %v480, %v479
    %v492 = vpack.c.b16 %v482, %v481
    %v493 = vpack.c.b16 %v484, %v483
    %v494 = vpack.c.b16 %v486, %v485
    %503 = vmatprep.subr.bf16.mxu0 0
    %504 = vmatpush1.bf16.msra.mxu0 %v494
    %505 = vmatprep.subr.bf16.mxu0 0
    %506 = vmatpush1.bf16.msra.mxu0 %v493
    %507 = vmatprep.subr.bf16.mxu0 0
    %508 = vmatpush1.bf16.msra.mxu0 %v492
    %509 = vmatprep.subr.bf16.mxu0 0
    %510 = vmatpush1.bf16.msra.mxu0 %v491
    %511 = vmatprep.subr.bf16.mxu0 0
    %512 = vmatpush1.bf16.msra.mxu0 %v490
    %513 = vmatprep.subr.bf16.mxu0 0
    %514 = vmatpush1.bf16.msra.mxu0 %v489
    %515 = vmatprep.subr.bf16.mxu0 0
    %516 = vmatpush1.bf16.msra.mxu0 %v488
    %517 = vmatprep.subr.bf16.mxu0 0
    %518 = vmatpush1.bf16.msra.mxu0 %v487
    %519 = vmatprep.subr.bf16.mxu0 0
    %520 = vmatpush2.bf16.msra.mxu0 0
    %521 = vmatprep.subr.bf16.mxu0 0
    %522 = vmatpush2.bf16.msra.mxu0 0
    %523 = vmatprep.subr.bf16.mxu0 0
    %524 = vmatpush2.bf16.msra.mxu0 0
    %525 = vmatprep.subr.bf16.mxu0 0
    %526 = vmatpush2.bf16.msra.mxu0 0
    %527 = vmatprep.subr.bf16.mxu0 0
    %528 = vmatpush2.bf16.msra.mxu0 0
    %529 = vmatprep.subr.bf16.mxu0 0
    %530 = vmatpush2.bf16.msra.mxu0 0
    %531 = vmatprep.subr.bf16.mxu0 0
    %532 = vmatpush2.bf16.msra.mxu0 0
    %533 = vmatprep.subr.bf16.mxu0 0
    %534 = vmatpush2.bf16.msra.mxu0 0
    %535 = vmatprep.mubr.bf16.mxu0 0
    %536 = vmatmul.mubr.bf16.gmra.mxu0 %v429
    %v537 = vpop.f32.mrf.mxu0
    %v538 = vadd.f32 %v453, %v537
    %v539 = vpop.f32.mrf.mxu0
    %v540 = vpop.f32.mrf.mxu0
    %v541 = vadd.f32 %v453, %v540
    %v542 = vpop.f32.mrf.mxu0
    %543 = vmatprep.mubr.bf16.mxu0 0
    %544 = vmatmul.mubr.bf16.gmra.mxu0 %v430
    %v545 = vpop.f32.mrf.mxu0
    %v546 = vadd.f32 %v453, %v545
    %v547 = vpop.f32.mrf.mxu0
    %v548 = vpop.f32.mrf.mxu0
    %v549 = vadd.f32 %v453, %v548
    %v550 = vpop.f32.mrf.mxu0
    %551 = vmatprep.mubr.bf16.mxu0 0
    %552 = vmatmul.mubr.bf16.gmra.mxu0 %v431
    %v553 = vpop.f32.mrf.mxu0
    %v554 = vadd.f32 %v453, %v553
    %v555 = vpop.f32.mrf.mxu0
    %v556 = vpop.f32.mrf.mxu0
    %v557 = vadd.f32 %v453, %v556
    %v558 = vpop.f32.mrf.mxu0
    %559 = vdwg.mxu0
    %v560 = vld [vmem:[%s12] sm:$0x1]
    %v562 = vlaneseq
    %v563 = vshrl.u32 %v562, 7
    %v564 = vsub.s32 0, %v563
    %v565 = vrot.slane %v560, %v564
    %v567 = vmul.f32 %v565, %v538
    %v568 = vmul.f32 %v565, %v541
    %v569 = vmul.f32 %v565, %v546
    %v570 = vmul.f32 %v565, %v549
    %v571 = vmul.f32 %v565, %v554
    %v572 = vmul.f32 %v565, %v557
    %v573 = vadd.f32 %v262, %v567
    %v574 = vadd.f32 %v263, %v568
    %v575 = vadd.f32 %v264, %v569
    %v576 = vadd.f32 %v265, %v570
    %v577 = vadd.f32 %v266, %v571
    %v578 = vadd.f32 %v267, %v572
    %579 = vst [vmem:[#allocation2] sm:$0xff] %v573
    %580 = vst [vmem:[#allocation2 + $0x8] sm:$0xff] %v574
    %581 = vst [vmem:[#allocation2 + $0x10] sm:$0xff] %v575
    %582 = vst [vmem:[#allocation2 + $0x18] sm:$0xff] %v576
    %583 = vst [vmem:[#allocation2 + $0x20] sm:$0xff] %v577
    %584 = vst [vmem:[#allocation2 + $0x28] sm:$0xff] %v578
    // Predicated region
    $region54: #{mlpblock_forward.1} parent=1 // pred_check
      _
    $region55: #{mlpblock_forward.1} parent=1 // pred_check_branch
      %586 = sbr.rel (0) target = $region57
    $region56: #{mlpblock_forward.1} parent=1 // pred_region
      %s588 = ssub.s32 768, 768
      %589 = vsyncadd [#allocation3], %s588
      %s590 = sshll.u32 [#allocation2], 4
      %s591 = int_to_ptr.vmem [resolvable:$true] %s590
      %596 = dma.vmem_to_hbm [thread:$0]  %s591, 768, %s13, [#allocation3], 128, 128, 8
    $region57: #{mlpblock_forward.1} parent=1 // pred_fallthru
      _
    // Predicated region
    $region58: #{mlpblock_forward.1} parent=1 // pred_check
      _
    $region59: #{mlpblock_forward.1} parent=1 // pred_check_branch
      %598 = sbr.rel (0) target = $region61
    $region60: #{mlpblock_forward.1} parent=1 // pred_region
      %599 = dma.done [#allocation3], 768
    $region61: #{mlpblock_forward.1} parent=1 // pred_fallthru
      _
    %600 = vsyncpa [#allocation3], 1

</llo_original>
